<compile_context>
chip_gen: v5e
topology: v5e:2x2
jax: 0.10.0
libtpu: 0.0.40
codegen_flags: <defaults>
</compile_context>

<pallas_src>
import jax
import jax.numpy as jnp
import numpy as np
from jax.experimental import pallas as pl
from jax.experimental.pallas import tpu as pltpu


def _make_fcomb_kernel(n_mid_layers, compute_dtype):
    """Kernel closure for a fixed number of middle (hidden) 1x1 convs."""

    def kernel(x_ref, bias1_ref, *refs):
        # refs = (wt1, [wt_mid, b_mid] * n_mid_layers, wt_last, b_last, out_ref)
        out_ref = refs[-1]
        w_refs = refs[:-1]

        # First 1x1 conv: (F, Cf) @ (Cf, P) + per-batch z-folded bias, ReLU.
        # Matmul operands are compute_dtype (bf16 by default) and accumulate in
        # f32 on the MXU; bias adds / ReLU run in f32 on the VPU.
        h = jnp.dot(w_refs[0][...], x_ref[...],
                    preferred_element_type=jnp.float32)
        h = jnp.maximum(h + bias1_ref[...], 0.0)

        idx = 1
        # Middle 1x1 convs: (F, F) @ (F, P) + bias, ReLU.
        # NOTE: if vld/vst slots ever saturate from the (F, tile) f32
        # intermediates, process the tile in 512-lane sub-slabs inside a
        # lax.fori_loop(..., unroll=True) instead of materializing them fully.
        for _ in range(n_mid_layers):
            h = jnp.dot(w_refs[idx][...], h.astype(compute_dtype),
                        preferred_element_type=jnp.float32)
            h = jnp.maximum(h + w_refs[idx + 1][...], 0.0)
            idx += 2

        # Last 1x1 conv: (num_classes, F) @ (F, P) + bias (no activation).
        out = jnp.dot(w_refs[idx][...], h.astype(compute_dtype),
                      preferred_element_type=jnp.float32) + w_refs[idx + 1][...]
        out_ref[...] = out.astype(out_ref.dtype)

    return kernel


def _choose_tile(HW, B, Cf, F, num_classes, in_bytes, tile_pixels,
                 vmem_pixel_budget_bytes):
    """Pick the pixel-tile width (lane axis) under an explicit VMEM budget."""
    # Per-pixel VMEM footprint estimate (bytes):
    #   double-buffered x block       : 2 * Cf * in_bytes
    #   double-buffered f32 out block : 2 * num_classes * 4
    #   ~4 live (F, tile) f32 layer intermediates Mosaic keeps in VMEM
    per_pixel = 2 * Cf * in_bytes + 2 * num_classes * 4 + 4 * F * 4
    cap = max(512, (vmem_pixel_budget_bytes // per_pixel) // 512 * 512)
    tile = min(max(512, (tile_pixels // 512) * 512), cap)

    if HW <= tile:
        if B >= 2 or HW <= 128:
            # Whole image as one tile: the grid already has >= 2 programs, or
            # the image is too small to split on a 128-lane boundary.
            tile = HW
        else:
            # B == 1: a single tile would leave one v7x TensorCore idle.  Split
            # the pixel axis roughly in half (128-aligned) so the "parallel"
            # grid has at least two programs.
            tile = min(HW, ((HW + 1) // 2 + 127) // 128 * 128)
    return tile


def fcomb_forward(feature_map, z, params, *, tile_pixels=16384,
                  compute_dtype=jnp.bfloat16):
    """Fcomb forward.

    feature_map: (B, Cf, H, W)  float32   (NCHW, like PyTorch)
    z:           (B, L)         float32
    params: dict with 'w1','b1','w_mid' (list),'b_mid' (list),'w_last','b_last'
            weights are (C_in, C_out), biases are (C_out,)
    compute_dtype: dtype fed to the MXU (bf16 default ~halves HBM read
            traffic; accumulation is always f32).
    returns: (B, num_classes, H, W) in feature_map.dtype
    """
    B, Cf, H, W = feature_map.shape
    HW = H * W
    F = params["w1"].shape[1]
    num_classes = params["w_last"].shape[1]
    n_mid = len(params["w_mid"])

    # --- cheap per-batch fold of z into the first layer's bias (f32) --------
    # conv1(concat(x, z)) == w1[:Cf].T @ x + (w1[Cf:].T @ z + b1)
    bias1 = z.astype(jnp.float32) @ params["w1"][Cf:, :] + params["b1"]  # (B, F)
    bias1 = bias1.reshape(B, F, 1)

    # Pre-transposed weights in compute_dtype; biases stay f32 (they are added
    # to the f32 accumulators).
    wt1 = jnp.transpose(params["w1"][:Cf, :]).astype(compute_dtype)      # (F, Cf)
    flat_params = [wt1]
    for wm, bm in zip(params["w_mid"], params["b_mid"]):
        flat_params += [jnp.transpose(wm).astype(compute_dtype),         # (F, F)
                        bm.reshape(F, 1).astype(jnp.float32)]            # (F, 1)
    flat_params += [jnp.transpose(params["w_last"]).astype(compute_dtype),
                    params["b_last"].reshape(num_classes, 1).astype(jnp.float32)]

    # Consume NCHW directly: (B, Cf, H, W) -> (B, Cf, H*W), no data movement.
    x = feature_map.reshape(B, Cf, HW).astype(compute_dtype)

    in_bytes = np.dtype(compute_dtype).itemsize
    # 24 MiB of pixel-proportional buffers: comfortably inside the 48 MiB
    # scoped limit below and v7x's 64 MiB physical VMEM; huge on v5e/v6e.
    tile = _choose_tile(HW, B, Cf, F, num_classes, in_bytes, tile_pixels,
                        vmem_pixel_budget_bytes=24 << 20)
    n_tiles = pl.cdiv(HW, tile)     # partial last block handled by Pallas masking
    grid = (B, n_tiles)

    def full_spec(arr):
        # Grid-invariant (resident) weight/bias block.
        return pl.BlockSpec(arr.shape, lambda b, p: (0,) * arr.ndim)

    in_specs = [
        pl.BlockSpec((None, Cf, tile), lambda b, p: (b, 0, p)),   # streamed pixels
        pl.BlockSpec((None, F, 1), lambda b, p: (b, 0, 0)),       # per-batch bias1
    ]
    in_specs += [full_spec(p) for p in flat_params]               # resident weights

    out_spec = pl.BlockSpec((None, num_classes, tile), lambda b, p: (b, 0, p))

    kernel = _make_fcomb_kernel(n_mid, compute_dtype)

    out = pl.pallas_call(
        kernel,
        out_shape=jax.ShapeDtypeStruct((B, num_classes, HW), feature_map.dtype),
        grid_spec=pltpu.PrefetchScalarGridSpec(
            num_scalar_prefetch=0,
            grid=grid,
            in_specs=in_specs,
            out_specs=out_spec,
        ),
        compiler_params=pltpu.CompilerParams(
            dimension_semantics=("parallel", "parallel"),
            # Large pixel tiles need more than the scoped-VMEM defaults
            # (16 MiB v5e / 32 MiB v6e,v7x); 48 MiB still fits under v7x's
            # 64 MiB physical VMEM.
            vmem_limit_bytes=48 << 20),
    )(x, bias1, *flat_params)

    # (B, num_classes, H*W) -> NCHW, no transpose needed.
    return out.reshape(B, num_classes, H, W)


def init_fcomb_params(key, num_filters0, latent_dim, num_classes, no_convs_fcomb):
    """Deterministic synthetic parameter init (kaiming-ish normal)."""
    c_in = num_filters0 + latent_dim
    n_mid = no_convs_fcomb - 2
    keys = jax.random.split(key, 2 * (2 + n_mid))

    def w_init(k, fan_in, fan_out):
        return (jax.random.normal(k, (fan_in, fan_out), dtype=jnp.float32)
                * jnp.sqrt(2.0 / fan_in))

    params = {
        "w1": w_init(keys[0], c_in, num_filters0),
        "b1": 0.01 * jax.random.normal(keys[1], (num_filters0,), dtype=jnp.float32),
        "w_mid": [],
        "b_mid": [],
    }
    ki = 2
    for _ in range(n_mid):
        params["w_mid"].append(w_init(keys[ki], num_filters0, num_filters0))
        params["b_mid"].append(
            0.01 * jax.random.normal(keys[ki + 1], (num_filters0,), dtype=jnp.float32))
        ki += 2
    params["w_last"] = w_init(keys[ki], num_filters0, num_classes)
    params["b_last"] = 0.01 * jax.random.normal(
        keys[ki + 1], (num_classes,), dtype=jnp.float32)
    return params


def fcomb_reference(feature_map, z, params):
    """Pure-JAX reference (same math, no Pallas) for verification."""
    B, Cf, H, W = feature_map.shape
    L = z.shape[1]
    z_b = jnp.broadcast_to(z[:, :, None, None], (B, L, H, W))
    x = jnp.concatenate([feature_map, z_b], axis=1)
    h = jnp.transpose(x, (0, 2, 3, 1))  # NHWC
    h = jnp.maximum(h @ params["w1"] + params["b1"], 0.0)
    for wm, bm in zip(params["w_mid"], params["b_mid"]):
        h = jnp.maximum(h @ wm + bm, 0.0)
    out = h @ params["w_last"] + params["b_last"]
    return jnp.transpose(out, (0, 3, 1, 2))  # NCHW


if __name__ == "__main__":
    # Shapes consistent with the module:
    #   num_filters = [32, ...] (only [0] used), latent_dim = 8,
    #   num_classes = 4, no_convs_fcomb = 3 (=> 1 middle conv).
    B, H, W = 2, 16, 16
    num_filters0 = 32
    latent_dim = 8
    num_classes = 4
    no_convs_fcomb = 3

    key = jax.random.PRNGKey(0)
    k_feat, k_z, k_params = jax.random.split(key, 3)

    feature_map = jax.random.normal(
        k_feat, (B, num_filters0, H, W), dtype=jnp.float32)
    z = jax.random.normal(k_z, (B, latent_dim), dtype=jnp.float32)
    params = init_fcomb_params(
        k_params, num_filters0, latent_dim, num_classes, no_convs_fcomb)

    ref = fcomb_reference(feature_map, z, params)

    # 1) Exact f32 path, single pixel tile (HW <= tile).
    out_f32 = fcomb_forward(feature_map, z, params, compute_dtype=jnp.float32)
    out_f32 = jax.block_until_ready(out_f32)
    assert out_f32.shape == (B, num_classes, H, W), out_f32.shape
    assert jnp.allclose(out_f32, ref, atol=1e-4, rtol=1e-4), (
        float(jnp.max(jnp.abs(out_f32 - ref))))

    # 2) Default bf16-operand path (f32 accumulation) -- looser tolerance.
    out_bf16 = fcomb_forward(feature_map, z, params)
    out_bf16 = jax.block_until_ready(out_bf16)
    assert out_bf16.shape == (B, num_classes, H, W), out_bf16.shape
    assert jnp.allclose(out_bf16, ref, atol=5e-2, rtol=5e-2), (
        float(jnp.max(jnp.abs(out_bf16 - ref))))

    # 3) Multi-tile path with a partial last pixel block (masked tail):
    #    24*24 = 576 pixels with a 512-pixel tile -> blocks of 512 and 64.
    H2, W2 = 24, 24
    fm2 = jax.random.normal(k_feat, (B, num_filters0, H2, W2), dtype=jnp.float32)
    ref2 = fcomb_reference(fm2, z, params)
    out2 = fcomb_forward(fm2, z, params, tile_pixels=512,
                         compute_dtype=jnp.float32)
    out2 = jax.block_until_ready(out2)
    assert out2.shape == (B, num_classes, H2, W2), out2.shape
    assert jnp.allclose(out2, ref2, atol=1e-4, rtol=1e-4), (
        float(jnp.max(jnp.abs(out2 - ref2))))

    # 4) B == 1: the pixel axis is split so the grid still has >= 2 programs
    #    (keeps both v7x TensorCores busy).
    fm3, z3 = feature_map[:1], z[:1]
    ref3 = fcomb_reference(fm3, z3, params)
    out3 = fcomb_forward(fm3, z3, params)
    out3 = jax.block_until_ready(out3)
    assert out3.shape == (1, num_classes, H, W), out3.shape
    assert jnp.allclose(out3, ref3, atol=5e-2, rtol=5e-2), (
        float(jnp.max(jnp.abs(out3 - ref3))))

    print("KERNEL_OK")
</pallas_src>

<mosaic_0001>
module attributes {stable_mosaic.version = 11 : i64} {
  func.func @kernel(%arg0: i32, %arg1: i32, %arg2: memref<1x32x256xf32, #tpu.memory_space<vmem>>, %arg3: memref<1x32x1xf32, #tpu.memory_space<vmem>>, %arg4: memref<32x32xf32, #tpu.memory_space<vmem>>, %arg5: memref<32x32xf32, #tpu.memory_space<vmem>>, %arg6: memref<32x1xf32, #tpu.memory_space<vmem>>, %arg7: memref<4x32xf32, #tpu.memory_space<vmem>>, %arg8: memref<4x1xf32, #tpu.memory_space<vmem>>, %arg9: memref<1x4x256xf32, #tpu.memory_space<vmem>>) attributes {dimension_semantics = [#tpu.dimension_semantics<parallel>, #tpu.dimension_semantics<parallel>], iteration_bounds = array<i64: 2, 1>, scalar_prefetch = 0 : i64, scratch_operands = 0 : i64, tpu.core_type = #tpu.core_type<tc>, window_params = [{transform_indices = @transform_0, window_bounds = array<i64: 1, 32, 256>}, {transform_indices = @transform_1, window_bounds = array<i64: 1, 32, 1>}, {pipeline_mode = #tpu.pipeline_mode<synchronous>, transform_indices = @transform_2, window_bounds = array<i64: 32, 32>}, {pipeline_mode = #tpu.pipeline_mode<synchronous>, transform_indices = @transform_3, window_bounds = array<i64: 32, 32>}, {pipeline_mode = #tpu.pipeline_mode<synchronous>, transform_indices = @transform_4, window_bounds = array<i64: 32, 1>}, {pipeline_mode = #tpu.pipeline_mode<synchronous>, transform_indices = @transform_5, window_bounds = array<i64: 4, 32>}, {pipeline_mode = #tpu.pipeline_mode<synchronous>, transform_indices = @transform_6, window_bounds = array<i64: 4, 1>}, {transform_indices = @transform_7, window_bounds = array<i64: 1, 4, 256>}]} {
    %c0 = arith.constant 0 : index
    %c0_0 = arith.constant 0 : index
    %0 = vector.load %arg4[%c0, %c0_0] : memref<32x32xf32, #tpu.memory_space<vmem>>, vector<32x32xf32>
    %c0_1 = arith.constant 0 : index
    %c0_2 = arith.constant 0 : index
    %c0_3 = arith.constant 0 : index
    %1 = vector.load %arg2[%c0_1, %c0_2, %c0_3] : memref<1x32x256xf32, #tpu.memory_space<vmem>>, vector<1x32x256xf32>
    %2 = vector.shape_cast %1 : vector<1x32x256xf32> to vector<32x256xf32>
    %cst = arith.constant dense<0.000000e+00> : vector<32x256xf32>
    %3 = tpu.matmul %0, %2, %cst {dimension_numbers = #tpu.dot_dimension_numbers<[1], [0], [0], [1], [0, 0, 1, 1], [], []>} : vector<32x32xf32>, vector<32x256xf32>, vector<32x256xf32> -> vector<32x256xf32>
    %c0_4 = arith.constant 0 : index
    %c0_5 = arith.constant 0 : index
    %c0_6 = arith.constant 0 : index
    %4 = vector.load %arg3[%c0_4, %c0_5, %c0_6] : memref<1x32x1xf32, #tpu.memory_space<vmem>>, vector<1x32x1xf32>
    %5 = vector.shape_cast %4 : vector<1x32x1xf32> to vector<32x1xf32>
    %6 = vector.broadcast %5 : vector<32x1xf32> to vector<32x256xf32>
    %7 = arith.addf %3, %6 : vector<32x256xf32>
    %cst_7 = arith.constant 0.000000e+00 : f32
    %8 = vector.broadcast %cst_7 : f32 to vector<32x256xf32>
    %9 = arith.maximumf %7, %8 : vector<32x256xf32>
    %c0_8 = arith.constant 0 : index
    %c0_9 = arith.constant 0 : index
    %10 = vector.load %arg5[%c0_8, %c0_9] : memref<32x32xf32, #tpu.memory_space<vmem>>, vector<32x32xf32>
    %cst_10 = arith.constant dense<0.000000e+00> : vector<32x256xf32>
    %11 = tpu.matmul %10, %9, %cst_10 {dimension_numbers = #tpu.dot_dimension_numbers<[1], [0], [0], [1], [0, 0, 1, 1], [], []>} : vector<32x32xf32>, vector<32x256xf32>, vector<32x256xf32> -> vector<32x256xf32>
    %c0_11 = arith.constant 0 : index
    %c0_12 = arith.constant 0 : index
    %12 = vector.load %arg6[%c0_11, %c0_12] : memref<32x1xf32, #tpu.memory_space<vmem>>, vector<32x1xf32>
    %13 = vector.broadcast %12 : vector<32x1xf32> to vector<32x256xf32>
    %14 = arith.addf %11, %13 : vector<32x256xf32>
    %cst_13 = arith.constant 0.000000e+00 : f32
    %15 = vector.broadcast %cst_13 : f32 to vector<32x256xf32>
    %16 = arith.maximumf %14, %15 : vector<32x256xf32>
    %c0_14 = arith.constant 0 : index
    %c0_15 = arith.constant 0 : index
    %17 = vector.load %arg7[%c0_14, %c0_15] : memref<4x32xf32, #tpu.memory_space<vmem>>, vector<4x32xf32>
    %cst_16 = arith.constant dense<0.000000e+00> : vector<4x256xf32>
    %18 = tpu.matmul %17, %16, %cst_16 {dimension_numbers = #tpu.dot_dimension_numbers<[1], [0], [0], [1], [0, 0, 1, 1], [], []>} : vector<4x32xf32>, vector<32x256xf32>, vector<4x256xf32> -> vector<4x256xf32>
    %c0_17 = arith.constant 0 : index
    %c0_18 = arith.constant 0 : index
    %19 = vector.load %arg8[%c0_17, %c0_18] : memref<4x1xf32, #tpu.memory_space<vmem>>, vector<4x1xf32>
    %20 = vector.broadcast %19 : vector<4x1xf32> to vector<4x256xf32>
    %21 = arith.addf %18, %20 : vector<4x256xf32>
    %c0_19 = arith.constant 0 : index
    %c0_20 = arith.constant 0 : index
    %c0_21 = arith.constant 0 : index
    %22 = vector.load %arg9[%c0_19, %c0_20, %c0_21] : memref<1x4x256xf32, #tpu.memory_space<vmem>>, vector<1x4x256xf32>
    %23 = vector.shape_cast %22 : vector<1x4x256xf32> to vector<4x256xf32>
    %24 = vector.shape_cast %21 : vector<4x256xf32> to vector<1x4x256xf32>
    tpu.vector_store %arg9[%c0_19, %c0_20, %c0_21], %24 {strides = array<i32>} : memref<1x4x256xf32, #tpu.memory_space<vmem>>, vector<1x4x256xf32>,
    return
  }
  func.func @transform_0(%arg0: i32, %arg1: i32) -> (i32, i32, i32) {
    %c0_i32 = arith.constant 0 : i32
    %c0_i32_0 = arith.constant 0 : i32
    return %arg0, %c0_i32, %arg1 : i32, i32, i32
  }
  func.func @transform_1(%arg0: i32, %arg1: i32) -> (i32, i32, i32) {
    %c0_i32 = arith.constant 0 : i32
    %c0_i32_0 = arith.constant 0 : i32
    %c0_i32_1 = arith.constant 0 : i32
    return %arg0, %c0_i32, %c0_i32_0 : i32, i32, i32
  }
  func.func @transform_2(%arg0: i32, %arg1: i32) -> (i32, i32) {
    %c0_i32 = arith.constant 0 : i32
    %c0_i32_0 = arith.constant 0 : i32
    %c0_i32_1 = arith.constant 0 : i32
    return %c0_i32, %c0_i32_0 : i32, i32
  }
  func.func @transform_3(%arg0: i32, %arg1: i32) -> (i32, i32) {
    %c0_i32 = arith.constant 0 : i32
    %c0_i32_0 = arith.constant 0 : i32
    %c0_i32_1 = arith.constant 0 : i32
    return %c0_i32, %c0_i32_0 : i32, i32
  }
  func.func @transform_4(%arg0: i32, %arg1: i32) -> (i32, i32) {
    %c0_i32 = arith.constant 0 : i32
    %c0_i32_0 = arith.constant 0 : i32
    %c0_i32_1 = arith.constant 0 : i32
    return %c0_i32, %c0_i32_0 : i32, i32
  }
  func.func @transform_5(%arg0: i32, %arg1: i32) -> (i32, i32) {
    %c0_i32 = arith.constant 0 : i32
    %c0_i32_0 = arith.constant 0 : i32
    %c0_i32_1 = arith.constant 0 : i32
    return %c0_i32, %c0_i32_0 : i32, i32
  }
  func.func @transform_6(%arg0: i32, %arg1: i32) -> (i32, i32) {
    %c0_i32 = arith.constant 0 : i32
    %c0_i32_0 = arith.constant 0 : i32
    %c0_i32_1 = arith.constant 0 : i32
    return %c0_i32, %c0_i32_0 : i32, i32
  }
  func.func @transform_7(%arg0: i32, %arg1: i32) -> (i32, i32, i32) {
    %c0_i32 = arith.constant 0 : i32
    %c0_i32_0 = arith.constant 0 : i32
    return %arg0, %c0_i32, %arg1 : i32, i32, i32
  }
}

</mosaic_0001>

<llo_original>
// kernel: tpu_custom_call.1
$region0: #{tpu_custom_call.1}
  #allocation0 [shape = 'u32[]', space=smem, size = 0x4, offset = 0x4, fixed_abs, tag = 'smem constant byte address 0x4 - core index']
  #allocation1 [shape = 'u32[72,128]{1,0:T(1,128)}', space=vmem, size = 0x9000, scoped, tag = 'internal scratch']
  %s0 = inlined_call_operand.hbm [shape: f32[2,32,256], index: 0, kind: input, shape index: {}]
  %s1 = inlined_call_operand.vmem [shape: f32[2,32,1], index: 1, kind: input, shape index: {}]
  %s2 = inlined_call_operand.vmem [shape: f32[32,32], index: 2, kind: input, shape index: {}]
  %s3 = inlined_call_operand.vmem [shape: f32[32,32], index: 3, kind: input, shape index: {}]
  %s4 = inlined_call_operand.vmem [shape: f32[32,1], index: 4, kind: input, shape index: {}]
  %s5 = inlined_call_operand.vmem [shape: f32[4,32], index: 5, kind: input, shape index: {}]
  %s6 = inlined_call_operand.vmem [shape: f32[4,1], index: 6, kind: input, shape index: {}]
  %s7 = inlined_call_operand.hbm [shape: f32[2,4,256], index: 7, kind: output, shape index: {}]
  %s8 = sld [smem:[#allocation0]]
  $region65: #{tpu_custom_call.1} parent=0
    _
  %s10 = ssub.s32 1, %s8
  %s11 = scalar_select 0, %s10, %s8
  $region1: #{tpu_custom_call.1} parent=0
    #allocation2 [shape = 'u8[65536]{0}', space=vmem, size = 0x10000, scoped, tag = 'input window, operand 0']
    #allocation3 [shape = 's32[2]{0}', space=sflag, size = 0x8, scoped, tag = 'scoped memory for tpu_custom_call.1']
    #allocation4 [shape = 's32[2]{0}', space=sflag, size = 0x8, scoped, tag = 'scoped memory for tpu_custom_call.1']
    #allocation5 [shape = 'u8[8192]{0}', space=vmem, size = 0x2000, scoped, tag = 'output window, operand 0']
    %12 = vsyncpa [#allocation3], 0
    %s13 = scalar_lea.sflag [#allocation3], 1
    %14 = vsyncpa %s13, 0
    %15 = vsyncpa [#allocation4], 0
    %s16 = scalar_lea.sflag [#allocation4], 1
    %17 = vsyncpa %s16, 0
    loop: start=0, step=1, limit=4
    $region2: #{tpu_custom_call.1} parent=1 // loop_pre_header
      _
    $region3: #{tpu_custom_call.1} parent=1 // loop_header
      %s19 = sphi 0, %s23
      %p20 = scmp.ge.s32.totalorder %s19, 4
      %s26 = sphi 0, %s38
      %s27 = sphi 0, %s34
      %s28 = sphi 0, %s26
      %s29 = sphi 0, %s27
      %s30 = sphi 0, %s28
      %s31 = sphi 0, %s29
      %s43 = sphi 0, %s45
      %s46 = sphi 0, %s43
      %s47 = sphi 0, %s46
      %s63 = sphi 0, %s47
      %s69 = sphi 0, %s71
      %s72 = sphi 0, %s69
      %s73 = sphi 0, %s72
      %s89 = sphi 0, %s73
      %s93 = sphi 0, %s93
      %s95 = sphi 0, %s93
      %s96 = sphi 0, %s95
      %s110 = sphi 0, %s96
      %s114 = sphi 0, %s114
      %s116 = sphi 0, %s114
      %s117 = sphi 0, %s116
      %s131 = sphi 0, %s117
      %s135 = sphi 0, %s135
      %s137 = sphi 0, %s135
      %s138 = sphi 0, %s137
      %s152 = sphi 0, %s138
      %s156 = sphi 0, %s156
      %s158 = sphi 0, %s156
      %s159 = sphi 0, %s158
      %s173 = sphi 0, %s159
      %s177 = sphi 0, %s177
      %s179 = sphi 0, %s177
      %s180 = sphi 0, %s179
      %s194 = sphi 0, %s180
      %s202 = sphi 0, %s204
      %s205 = sphi 0, %s202
      %s206 = sphi 0, %s205
      %s222 = sphi 0, %s206
    $region4: #{tpu_custom_call.1} parent=1 // loop_header_branch
      %22 = sbr.rel (%p20) target = $region8
    $region5: #{tpu_custom_call.1} parent=1 // loop_body
      %s24 = ssub.s32 %s19, 1
      %s25 = ssub.s32 %s19, 2
      %s32 = sadd.s32 1, %s27
      %p33 = scmp.ge.s32.totalorder %s32, 1
      %s34 = scalar_select %p33, 0, %s32
      %s35 = sadd.s32 1, %s26
      %s36 = scalar_select %p33, %s35, %s26
      %p37 = scmp.ge.s32.totalorder %s36, 2
      %s38 = scalar_select %p37, 0, %s36
      %s39 = ssub.s32 %s26, %s38
      %s40 = ssub.s32 %s27, %s34
      %s41 = sor.u32 %s39, %s40
      %p42 = scmp.eq.s32.totalorder %s41, 0
      %s44 = sadd.s32 %s43, 1
      %s45 = scalar_select %p42, %s43, %s44
      %p48 = pneg %p42
      %p49 = scmp.eq.s32.totalorder %s19, 1
      %p50 = por %p48, %p49
      %p51 = scmp.ne.s32.totalorder %s43, %s46
      %p52 = scmp.eq.s32.totalorder %s19, 0
      %p53 = por %p51, %p52
      %p54 = scmp.ne.s32.totalorder %s43, %s46
      %p55 = scmp.eq.s32.totalorder %s24, 1
      %p56 = por %p54, %p55
      %p57 = scmp.ne.s32.totalorder %s46, %s47
      %p58 = scmp.eq.s32.totalorder %s24, 0
      %p59 = por %p57, %p58
      %p60 = scmp.ne.s32.totalorder %s46, %s47
      %p61 = scmp.eq.s32.totalorder %s25, 1
      %p62 = por %p60, %p61
      %p64 = scmp.ne.s32.totalorder %s47, %s63
      %p65 = scmp.eq.s32.totalorder %s25, 0
      %p66 = por %p64, %p65
      %s67 = ssub.s32 %s26, %s38
      %p68 = scmp.eq.s32.totalorder %s67, 0
      %s70 = sadd.s32 %s69, 1
      %s71 = scalar_select %p68, %s69, %s70
      %p74 = pneg %p68
      %p75 = scmp.eq.s32.totalorder %s19, 1
      %p76 = por %p74, %p75
      %p77 = scmp.ne.s32.totalorder %s69, %s72
      %p78 = scmp.eq.s32.totalorder %s19, 0
      %p79 = por %p77, %p78
      %p80 = scmp.ne.s32.totalorder %s69, %s72
      %p81 = scmp.eq.s32.totalorder %s24, 1
      %p82 = por %p80, %p81
      %p83 = scmp.ne.s32.totalorder %s72, %s73
      %p84 = scmp.eq.s32.totalorder %s24, 0
      %p85 = por %p83, %p84
      %p86 = scmp.ne.s32.totalorder %s72, %s73
      %p87 = scmp.eq.s32.totalorder %s25, 1
      %p88 = por %p86, %p87
      %p90 = scmp.ne.s32.totalorder %s73, %s89
      %p91 = scmp.eq.s32.totalorder %s25, 0
      %p92 = por %p90, %p91
      %s94 = sadd.s32 %s93, 1
      %p97 = scmp.eq.s32.totalorder %s19, 1
      %p98 = scmp.ne.s32.totalorder %s93, %s95
      %p99 = scmp.eq.s32.totalorder %s19, 0
      %p100 = por %p98, %p99
      %p101 = scmp.ne.s32.totalorder %s93, %s95
      %p102 = scmp.eq.s32.totalorder %s24, 1
      %p103 = por %p101, %p102
      %p104 = scmp.ne.s32.totalorder %s95, %s96
      %p105 = scmp.eq.s32.totalorder %s24, 0
      %p106 = por %p104, %p105
      %p107 = scmp.ne.s32.totalorder %s95, %s96
      %p108 = scmp.eq.s32.totalorder %s25, 1
      %p109 = por %p107, %p108
      %p111 = scmp.ne.s32.totalorder %s96, %s110
      %p112 = scmp.eq.s32.totalorder %s25, 0
      %p113 = por %p111, %p112
      %s115 = sadd.s32 %s114, 1
      %p118 = scmp.eq.s32.totalorder %s19, 1
      %p119 = scmp.ne.s32.totalorder %s114, %s116
      %p120 = scmp.eq.s32.totalorder %s19, 0
      %p121 = por %p119, %p120
      %p122 = scmp.ne.s32.totalorder %s114, %s116
      %p123 = scmp.eq.s32.totalorder %s24, 1
      %p124 = por %p122, %p123
      %p125 = scmp.ne.s32.totalorder %s116, %s117
      %p126 = scmp.eq.s32.totalorder %s24, 0
      %p127 = por %p125, %p126
      %p128 = scmp.ne.s32.totalorder %s116, %s117
      %p129 = scmp.eq.s32.totalorder %s25, 1
      %p130 = por %p128, %p129
      %p132 = scmp.ne.s32.totalorder %s117, %s131
      %p133 = scmp.eq.s32.totalorder %s25, 0
      %p134 = por %p132, %p133
      %s136 = sadd.s32 %s135, 1
      %p139 = scmp.eq.s32.totalorder %s19, 1
      %p140 = scmp.ne.s32.totalorder %s135, %s137
      %p141 = scmp.eq.s32.totalorder %s19, 0
      %p142 = por %p140, %p141
      %p143 = scmp.ne.s32.totalorder %s135, %s137
      %p144 = scmp.eq.s32.totalorder %s24, 1
      %p145 = por %p143, %p144
      %p146 = scmp.ne.s32.totalorder %s137, %s138
      %p147 = scmp.eq.s32.totalorder %s24, 0
      %p148 = por %p146, %p147
      %p149 = scmp.ne.s32.totalorder %s137, %s138
      %p150 = scmp.eq.s32.totalorder %s25, 1
      %p151 = por %p149, %p150
      %p153 = scmp.ne.s32.totalorder %s138, %s152
      %p154 = scmp.eq.s32.totalorder %s25, 0
      %p155 = por %p153, %p154
      %s157 = sadd.s32 %s156, 1
      %p160 = scmp.eq.s32.totalorder %s19, 1
      %p161 = scmp.ne.s32.totalorder %s156, %s158
      %p162 = scmp.eq.s32.totalorder %s19, 0
      %p163 = por %p161, %p162
      %p164 = scmp.ne.s32.totalorder %s156, %s158
      %p165 = scmp.eq.s32.totalorder %s24, 1
      %p166 = por %p164, %p165
      %p167 = scmp.ne.s32.totalorder %s158, %s159
      %p168 = scmp.eq.s32.totalorder %s24, 0
      %p169 = por %p167, %p168
      %p170 = scmp.ne.s32.totalorder %s158, %s159
      %p171 = scmp.eq.s32.totalorder %s25, 1
      %p172 = por %p170, %p171
      %p174 = scmp.ne.s32.totalorder %s159, %s173
      %p175 = scmp.eq.s32.totalorder %s25, 0
      %p176 = por %p174, %p175
      %s178 = sadd.s32 %s177, 1
      %p181 = scmp.eq.s32.totalorder %s19, 1
      %p182 = scmp.ne.s32.totalorder %s177, %s179
      %p183 = scmp.eq.s32.totalorder %s19, 0
      %p184 = por %p182, %p183
      %p185 = scmp.ne.s32.totalorder %s177, %s179
      %p186 = scmp.eq.s32.totalorder %s24, 1
      %p187 = por %p185, %p186
      %p188 = scmp.ne.s32.totalorder %s179, %s180
      %p189 = scmp.eq.s32.totalorder %s24, 0
      %p190 = por %p188, %p189
      %p191 = scmp.ne.s32.totalorder %s179, %s180
      %p192 = scmp.eq.s32.totalorder %s25, 1
      %p193 = por %p191, %p192
      %p195 = scmp.ne.s32.totalorder %s180, %s194
      %p196 = scmp.eq.s32.totalorder %s25, 0
      %p197 = por %p195, %p196
      %s198 = ssub.s32 %s26, %s38
      %s199 = ssub.s32 %s27, %s34
      %s200 = sor.u32 %s198, %s199
      %p201 = scmp.eq.s32.totalorder %s200, 0
      %s203 = sadd.s32 %s202, 1
      %s204 = scalar_select %p201, %s202, %s203
      %p207 = pneg %p201
      %p208 = scmp.eq.s32.totalorder %s19, 1
      %p209 = por %p207, %p208
      %p210 = scmp.ne.s32.totalorder %s202, %s205
      %p211 = scmp.eq.s32.totalorder %s19, 0
      %p212 = por %p210, %p211
      %p213 = scmp.ne.s32.totalorder %s202, %s205
      %p214 = scmp.eq.s32.totalorder %s24, 1
      %p215 = por %p213, %p214
      %p216 = scmp.ne.s32.totalorder %s205, %s206
      %p217 = scmp.eq.s32.totalorder %s24, 0
      %p218 = por %p216, %p217
      %p219 = scmp.ne.s32.totalorder %s205, %s206
      %p220 = scmp.eq.s32.totalorder %s25, 1
      %p221 = por %p219, %p220
      %p223 = scmp.ne.s32.totalorder %s206, %s222
      %p224 = scmp.eq.s32.totalorder %s25, 0
      %p225 = por %p223, %p224
      %p226 = scmp.le.s32.totalorder 1, %s19
      %p227 = scmp.lt.s32.totalorder %s19, 3
      %p228 = pnand %p226, %p227
      %p229 = pneg %p228
      // Predicated region
      $region9: #{tpu_custom_call.1} parent=5 // pred_check
        _
      $region10: #{tpu_custom_call.1} parent=5 // pred_check_branch
        %231 = sbr.rel (%p228) target = $region12
      $region11: #{tpu_custom_call.1} parent=5 // pred_region
        %s232 = ssub.s32 %s19, 1
        // Predicated region
        $region13: #{tpu_custom_call.1} parent=11 // pred_check
          %p233 = pneg %p106
        $region14: #{tpu_custom_call.1} parent=11 // pred_check_branch
          %235 = sbr.rel (%p233) target = $region16
        $region15: #{tpu_custom_call.1} parent=11 // pred_region
          _
        $region16: #{tpu_custom_call.1} parent=11 // pred_fallthru
          _
        // Predicated region
        $region17: #{tpu_custom_call.1} parent=11 // pred_check
          %p236 = pneg %p127
        $region18: #{tpu_custom_call.1} parent=11 // pred_check_branch
          %238 = sbr.rel (%p236) target = $region20
        $region19: #{tpu_custom_call.1} parent=11 // pred_region
          _
        $region20: #{tpu_custom_call.1} parent=11 // pred_fallthru
          _
        // Predicated region
        $region21: #{tpu_custom_call.1} parent=11 // pred_check
          %p239 = pneg %p148
        $region22: #{tpu_custom_call.1} parent=11 // pred_check_branch
          %241 = sbr.rel (%p239) target = $region24
        $region23: #{tpu_custom_call.1} parent=11 // pred_region
          _
        $region24: #{tpu_custom_call.1} parent=11 // pred_fallthru
          _
        // Predicated region
        $region25: #{tpu_custom_call.1} parent=11 // pred_check
          %p242 = pneg %p169
        $region26: #{tpu_custom_call.1} parent=11 // pred_check_branch
          %244 = sbr.rel (%p242) target = $region28
        $region27: #{tpu_custom_call.1} parent=11 // pred_region
          _
        $region28: #{tpu_custom_call.1} parent=11 // pred_fallthru
          _
        // Predicated region
        $region29: #{tpu_custom_call.1} parent=11 // pred_check
          %p245 = pneg %p190
        $region30: #{tpu_custom_call.1} parent=11 // pred_check_branch
          %247 = sbr.rel (%p245) target = $region32
        $region31: #{tpu_custom_call.1} parent=11 // pred_region
          _
        $region32: #{tpu_custom_call.1} parent=11 // pred_fallthru
          _
      $region12: #{tpu_custom_call.1} parent=5 // pred_fallthru
        _
      %p248 = scmp.lt.s32.totalorder %s19, 2
      // Predicated region
      $region33: #{tpu_custom_call.1} parent=5 // pred_check
        %p249 = pneg %p248
      $region34: #{tpu_custom_call.1} parent=5 // pred_check_branch
        %251 = sbr.rel (%p249) target = $region36
      $region35: #{tpu_custom_call.1} parent=5 // pred_region
        // Predicated region
        $region37: #{tpu_custom_call.1} parent=35 // pred_check
          %p252 = pneg %p53
        $region38: #{tpu_custom_call.1} parent=35 // pred_check_branch
          %254 = sbr.rel (%p252) target = $region40
        $region39: #{tpu_custom_call.1} parent=35 // pred_region
          %s255 = sand.u32 %s43, 1
          %s256 = scalar_lea.sflag [#allocation3], %s255
          %s257 = sand.u32 %s43, 1
          %s258 = smul.addr %s257, 64
          %s259 = scalar_lea.vmem [#allocation2], %s258
          %s260 = smul.u32 2, %s27
          %262 = vsyncadd %s256, 0
          %s263 = smul.addr %s26, 8
          %s264 = sadd.s32 %s260, %s263
          %s265 = smul.addr %s264, 8
          %s266 = scalar_lea.hbm %s0, %s265
          %s267 = sshll.u32 %s266, 4
          %s268 = int_to_ptr.hbm [resolvable:$true] %s267
          %s269 = sshll.u32 %s259, 4
          %s270 = int_to_ptr.vmem [resolvable:$true] %s269
          %275 = dma.hbm_to_vmem [thread:$0]  %s268, 1024, %s270, %s256, 256, 256, 16
        $region40: #{tpu_custom_call.1} parent=35 // pred_fallthru
          _
        // Predicated region
        $region41: #{tpu_custom_call.1} parent=35 // pred_check
          %p276 = pneg %p79
        $region42: #{tpu_custom_call.1} parent=35 // pred_check_branch
          %278 = sbr.rel (%p276) target = $region44
        $region43: #{tpu_custom_call.1} parent=35 // pred_region
          %p279 = scmp.lt.s32.totalorder %s26, 1
          %s280 = scalar_select %p279, %s26, 1
          %s281 = smul.addr %s280, 4
          %s282 = smul.addr %s281, 8
          %s283 = scalar_lea.vmem %s1, %s282
        $region44: #{tpu_custom_call.1} parent=35 // pred_fallthru
          _
      $region36: #{tpu_custom_call.1} parent=5 // pred_fallthru
        _
      %p284 = scmp.le.s32.totalorder 1, %s19
      %p285 = scmp.lt.s32.totalorder %s19, 3
      %p286 = pnand %p284, %p285
      %p287 = pneg %p286
      // Predicated region
      $region45: #{tpu_custom_call.1} parent=5 // pred_check
        _
      $region46: #{tpu_custom_call.1} parent=5 // pred_check_branch
        %289 = sbr.rel (%p286) target = $region48
      $region47: #{tpu_custom_call.1} parent=5 // pred_region
        %s290 = ssub.s32 %s19, 1
        %s291 = sand.u32 %s46, 1
        %s292 = scalar_lea.sflag [#allocation3], %s291
        %s293 = sand.u32 %s46, 1
        %s294 = smul.addr %s293, 64
        %s295 = scalar_lea.vmem [#allocation2], %s294
        // Predicated region
        $region49: #{tpu_custom_call.1} parent=47 // pred_check
          %p296 = pneg %p59
        $region50: #{tpu_custom_call.1} parent=47 // pred_check_branch
          %298 = sbr.rel (%p296) target = $region52
        $region51: #{tpu_custom_call.1} parent=47 // pred_region
          %300 = dma.done %s292, 1024
        $region52: #{tpu_custom_call.1} parent=47 // pred_fallthru
          _
        %s301 = sand.u32 %s46, 1
        %s302 = scalar_lea.sflag [#allocation3], %s301
        %s303 = sand.u32 %s46, 1
        %s304 = smul.addr %s303, 64
        %s305 = scalar_lea.vmem [#allocation2], %s304
        %p306 = pneg %p59
        %p307 = pneg %p56
        %p308 = scmp.lt.s32.totalorder %s28, 1
        %s309 = scalar_select %p308, %s28, 1
        %s310 = smul.addr %s309, 4
        %s311 = smul.addr %s310, 8
        %s312 = scalar_lea.vmem %s1, %s311
        %p313 = pneg %p85
        %p314 = pneg %p82
        %p315 = pneg %p106
        %p316 = pneg %p103
        %p317 = pneg %p127
        %p318 = pneg %p124
        %p319 = pneg %p148
        %p320 = pneg %p145
        %p321 = pneg %p169
        %p322 = pneg %p166
        %p323 = pneg %p190
        %p324 = pneg %p187
        %p325 = pneg %p218
        %p326 = pneg %p215
        %s327 = sand.u32 %s205, 1
        %s328 = scalar_lea.sflag [#allocation4], %s327
        %s329 = sand.u32 %s205, 1
        %s330 = smul.addr %s329, 8
        %s331 = scalar_lea.vmem [#allocation5], %s330
        %s332 = smul.u32 2, %s29
        %p333 = scmp.lt.s32.totalorder %s28, 1
        %s334 = scalar_select %p333, %s28, 1
        %s335 = smul.addr %s334, 4
        %s336 = smul.addr %s335, 8
        %s337 = scalar_lea.vmem %s1, %s336
        %s338 = smul.u32 2, %s29
        %v339 = vld [vmem:[%s2] sm:$0xff]
        %v340 = vld [vmem:[%s2 + $0x8] sm:$0xff]
        %v341 = vld [vmem:[%s2 + $0x10] sm:$0xff]
        %v342 = vld [vmem:[%s2 + $0x18] sm:$0xff]
        %v343 = vld [vmem:[%s295] sm:$0xff]
        %v344 = vld [vmem:[%s295 + $0x8] sm:$0xff]
        %v345 = vld [vmem:[%s295 + $0x10] sm:$0xff]
        %v346 = vld [vmem:[%s295 + $0x18] sm:$0xff]
        %v347 = vld [vmem:[%s295 + $0x20] sm:$0xff]
        %v348 = vld [vmem:[%s295 + $0x28] sm:$0xff]
        %v349 = vld [vmem:[%s295 + $0x30] sm:$0xff]
        %v350 = vld [vmem:[%s295 + $0x38] sm:$0xff]
        %v351 = vld [vmem:[%s337] sm:$0xff]
        %v352 = vld [vmem:[%s337 + $0x8] sm:$0xff]
        %v353 = vld [vmem:[%s337 + $0x10] sm:$0xff]
        %v354 = vld [vmem:[%s337 + $0x18] sm:$0xff]
        %356 = vset.pattern.permute.xlu0 0
        %357 = vperm.xlu0 %356, %v351
        %v358 = vpop.permute.xlu0 %357
        %361 = vset.pattern.permute.xlu0 0
        %362 = vperm.xlu0 %361, %v352
        %v363 = vpop.permute.xlu0 %362
        %366 = vset.pattern.permute.xlu0 0
        %367 = vperm.xlu0 %366, %v353
        %v368 = vpop.permute.xlu0 %367
        %371 = vset.pattern.permute.xlu0 0
        %372 = vperm.xlu0 %371, %v354
        %v373 = vpop.permute.xlu0 %372
        %vm375 = vcmask 261120
        %v377 = vsel %vm375, %v339, 0
        %v380 = vsel %vm375, %v340, 0
        %v383 = vsel %vm375, %v341, 0
        %v386 = vsel %vm375, %v342, 0
        %388 = vmatpush.msra.mxu0 0.0
        %389 = vmatpush.msra.mxu0 0.0
        %390 = vmatpush.msra.mxu0 0.0
        %391 = vmatpush.msra.mxu0 0.0
        %392 = vmatpush.msra.mxu0 0.0
        %393 = vmatpush.msra.mxu0 0.0
        %394 = vmatpush.msra.mxu0 0.0
        %395 = vmatpush.msra.mxu0 0.0
        %396 = vmatpush.msra.mxu0 0.0
        %397 = vmatpush.msra.mxu0 0.0
        %398 = vmatpush.msra.mxu0 0.0
        %399 = vmatpush.msra.mxu0 0.0
        %400 = vmatpush.msra.mxu0 %v349
        %401 = vmatpush.msra.mxu0 %v347
        %402 = vmatpush.msra.mxu0 %v345
        %403 = vmatpush.msra.mxu0 %v343
        %404 = vmatmul.f32.gmra.mxu0 %v377
        %v405 = vpop.f32.mrf.mxu0
        %v406 = vadd.f32 %v358, %v405
        %407 = vmatmul.f32.gmra.mxu0 %v380
        %v408 = vpop.f32.mrf.mxu0
        %v409 = vadd.f32 %v363, %v408
        %410 = vmatmul.f32.gmra.mxu0 %v383
        %v411 = vpop.f32.mrf.mxu0
        %v412 = vadd.f32 %v368, %v411
        %413 = vmatmul.f32.gmra.mxu0 %v386
        %v414 = vpop.f32.mrf.mxu0
        %v415 = vadd.f32 %v373, %v414
        %416 = vdwg.mxu0
        %417 = vmatpush.msra.mxu0 0.0
        %418 = vmatpush.msra.mxu0 0.0
        %419 = vmatpush.msra.mxu0 0.0
        %420 = vmatpush.msra.mxu0 0.0
        %421 = vmatpush.msra.mxu0 0.0
        %422 = vmatpush.msra.mxu0 0.0
        %423 = vmatpush.msra.mxu0 0.0
        %424 = vmatpush.msra.mxu0 0.0
        %425 = vmatpush.msra.mxu0 0.0
        %426 = vmatpush.msra.mxu0 0.0
        %427 = vmatpush.msra.mxu0 0.0
        %428 = vmatpush.msra.mxu0 0.0
        %429 = vmatpush.msra.mxu0 %v350
        %430 = vmatpush.msra.mxu0 %v348
        %431 = vmatpush.msra.mxu0 %v346
        %432 = vmatpush.msra.mxu0 %v344
        %433 = vmatmul.f32.gmra.mxu0 %v377
        %v434 = vpop.f32.mrf.mxu0
        %v435 = vadd.f32 %v358, %v434
        %436 = vmatmul.f32.gmra.mxu0 %v380
        %v437 = vpop.f32.mrf.mxu0
        %v438 = vadd.f32 %v363, %v437
        %439 = vmatmul.f32.gmra.mxu0 %v383
        %v440 = vpop.f32.mrf.mxu0
        %v441 = vadd.f32 %v368, %v440
        %442 = vmatmul.f32.gmra.mxu0 %v386
        %v443 = vpop.f32.mrf.mxu0
        %v444 = vadd.f32 %v373, %v443
        %445 = vdwg.mxu0
        %v446 = vmax.f32 %v406, 0.0
        %v447 = vmax.f32 %v435, 0.0
        %v448 = vmax.f32 %v409, 0.0
        %v449 = vmax.f32 %v438, 0.0
        %v450 = vmax.f32 %v412, 0.0
        %v451 = vmax.f32 %v441, 0.0
        %v452 = vmax.f32 %v415, 0.0
        %v453 = vmax.f32 %v444, 0.0
        %v454 = vld [vmem:[%s3] sm:$0xff]
        %v455 = vld [vmem:[%s3 + $0x8] sm:$0xff]
        %v456 = vld [vmem:[%s3 + $0x10] sm:$0xff]
        %v457 = vld [vmem:[%s3 + $0x18] sm:$0xff]
        %v458 = vld [vmem:[%s4] sm:$0xff]
        %v459 = vld [vmem:[%s4 + $0x8] sm:$0xff]
        %v460 = vld [vmem:[%s4 + $0x10] sm:$0xff]
        %v461 = vld [vmem:[%s4 + $0x18] sm:$0xff]
        %463 = vset.pattern.permute.xlu0 0
        %464 = vperm.xlu0 %463, %v458
        %v465 = vpop.permute.xlu0 %464
        %468 = vset.pattern.permute.xlu0 0
        %469 = vperm.xlu0 %468, %v459
        %v470 = vpop.permute.xlu0 %469
        %473 = vset.pattern.permute.xlu0 0
        %474 = vperm.xlu0 %473, %v460
        %v475 = vpop.permute.xlu0 %474
        %478 = vset.pattern.permute.xlu0 0
        %479 = vperm.xlu0 %478, %v461
        %v480 = vpop.permute.xlu0 %479
        %v483 = vsel %vm375, %v454, 0
        %v486 = vsel %vm375, %v455, 0
        %v489 = vsel %vm375, %v456, 0
        %v492 = vsel %vm375, %v457, 0
        %494 = vmatpush.msra.mxu0 0.0
        %495 = vmatpush.msra.mxu0 0.0
        %496 = vmatpush.msra.mxu0 0.0
        %497 = vmatpush.msra.mxu0 0.0
        %498 = vmatpush.msra.mxu0 0.0
        %499 = vmatpush.msra.mxu0 0.0
        %500 = vmatpush.msra.mxu0 0.0
        %501 = vmatpush.msra.mxu0 0.0
        %502 = vmatpush.msra.mxu0 0.0
        %503 = vmatpush.msra.mxu0 0.0
        %504 = vmatpush.msra.mxu0 0.0
        %505 = vmatpush.msra.mxu0 0.0
        %506 = vmatpush.msra.mxu0 %v452
        %507 = vmatpush.msra.mxu0 %v450
        %508 = vmatpush.msra.mxu0 %v448
        %509 = vmatpush.msra.mxu0 %v446
        %510 = vmatmul.f32.gmra.mxu0 %v483
        %v511 = vpop.f32.mrf.mxu0
        %v512 = vadd.f32 %v465, %v511
        %513 = vmatmul.f32.gmra.mxu0 %v486
        %v514 = vpop.f32.mrf.mxu0
        %v515 = vadd.f32 %v470, %v514
        %516 = vmatmul.f32.gmra.mxu0 %v489
        %v517 = vpop.f32.mrf.mxu0
        %v518 = vadd.f32 %v475, %v517
        %519 = vmatmul.f32.gmra.mxu0 %v492
        %v520 = vpop.f32.mrf.mxu0
        %v521 = vadd.f32 %v480, %v520
        %522 = vdwg.mxu0
        %523 = vmatpush.msra.mxu0 0.0
        %524 = vmatpush.msra.mxu0 0.0
        %525 = vmatpush.msra.mxu0 0.0
        %526 = vmatpush.msra.mxu0 0.0
        %527 = vmatpush.msra.mxu0 0.0
        %528 = vmatpush.msra.mxu0 0.0
        %529 = vmatpush.msra.mxu0 0.0
        %530 = vmatpush.msra.mxu0 0.0
        %531 = vmatpush.msra.mxu0 0.0
        %532 = vmatpush.msra.mxu0 0.0
        %533 = vmatpush.msra.mxu0 0.0
        %534 = vmatpush.msra.mxu0 0.0
        %535 = vmatpush.msra.mxu0 %v453
        %536 = vmatpush.msra.mxu0 %v451
        %537 = vmatpush.msra.mxu0 %v449
        %538 = vmatpush.msra.mxu0 %v447
        %539 = vmatmul.f32.gmra.mxu0 %v483
        %v540 = vpop.f32.mrf.mxu0
        %v541 = vadd.f32 %v465, %v540
        %542 = vmatmul.f32.gmra.mxu0 %v486
        %v543 = vpop.f32.mrf.mxu0
        %v544 = vadd.f32 %v470, %v543
        %545 = vmatmul.f32.gmra.mxu0 %v489
        %v546 = vpop.f32.mrf.mxu0
        %v547 = vadd.f32 %v475, %v546
        %548 = vmatmul.f32.gmra.mxu0 %v492
        %v549 = vpop.f32.mrf.mxu0
        %v550 = vadd.f32 %v480, %v549
        %551 = vdwg.mxu0
        %v552 = vmax.f32 %v512, 0.0
        %v553 = vmax.f32 %v541, 0.0
        %v554 = vmax.f32 %v515, 0.0
        %v555 = vmax.f32 %v544, 0.0
        %v556 = vmax.f32 %v518, 0.0
        %v557 = vmax.f32 %v547, 0.0
        %v558 = vmax.f32 %v521, 0.0
        %v559 = vmax.f32 %v550, 0.0
        %v560 = vld [vmem:[%s5] sm:$0xf]
        %v561 = vld [vmem:[%s6] sm:$0xf]
        %563 = vset.pattern.permute.xlu0 0
        %564 = vperm.xlu0 %563, %v561
        %v565 = vpop.permute.xlu0 %564
        %v568 = vsel %vm375, %v560, 0
        %570 = vmatpush.msra.mxu0 0.0
        %571 = vmatpush.msra.mxu0 0.0
        %572 = vmatpush.msra.mxu0 0.0
        %573 = vmatpush.msra.mxu0 0.0
        %574 = vmatpush.msra.mxu0 0.0
        %575 = vmatpush.msra.mxu0 0.0
        %576 = vmatpush.msra.mxu0 0.0
        %577 = vmatpush.msra.mxu0 0.0
        %578 = vmatpush.msra.mxu0 0.0
        %579 = vmatpush.msra.mxu0 0.0
        %580 = vmatpush.msra.mxu0 0.0
        %581 = vmatpush.msra.mxu0 0.0
        %582 = vmatpush.msra.mxu0 %v558
        %583 = vmatpush.msra.mxu0 %v556
        %584 = vmatpush.msra.mxu0 %v554
        %585 = vmatpush.msra.mxu0 %v552
        %586 = vmatmul.f32.gmra.mxu0 %v568
        %v587 = vpop.f32.mrf.mxu0
        %v588 = vadd.f32 %v565, %v587
        %589 = vdwg.mxu0
        %590 = vmatpush.msra.mxu0 0.0
        %591 = vmatpush.msra.mxu0 0.0
        %592 = vmatpush.msra.mxu0 0.0
        %593 = vmatpush.msra.mxu0 0.0
        %594 = vmatpush.msra.mxu0 0.0
        %595 = vmatpush.msra.mxu0 0.0
        %596 = vmatpush.msra.mxu0 0.0
        %597 = vmatpush.msra.mxu0 0.0
        %598 = vmatpush.msra.mxu0 0.0
        %599 = vmatpush.msra.mxu0 0.0
        %600 = vmatpush.msra.mxu0 0.0
        %601 = vmatpush.msra.mxu0 0.0
        %602 = vmatpush.msra.mxu0 %v559
        %603 = vmatpush.msra.mxu0 %v557
        %604 = vmatpush.msra.mxu0 %v555
        %605 = vmatpush.msra.mxu0 %v553
        %606 = vmatmul.f32.gmra.mxu0 %v568
        %v607 = vpop.f32.mrf.mxu0
        %v608 = vadd.f32 %v565, %v607
        %609 = vdwg.mxu0
        %v612 = vrot.slane %v608, 4
        %vm613 = vcmask 1043456
        %v614 = vsel %vm613, %v588, %v612
        %616 = vst [vmem:[%s331] sm:$0xff] %v614
        %s617 = sand.u32 %s205, 1
        %s618 = scalar_lea.sflag [#allocation4], %s617
        %s619 = sand.u32 %s205, 1
        %s620 = smul.addr %s619, 8
        %s621 = scalar_lea.vmem [#allocation5], %s620
        // Predicated region
        $region53: #{tpu_custom_call.1} parent=47 // pred_check
          %p622 = pneg %p215
        $region54: #{tpu_custom_call.1} parent=47 // pred_check_branch
          %624 = sbr.rel (%p622) target = $region56
        $region55: #{tpu_custom_call.1} parent=47 // pred_region
          %s625 = smul.u32 2, %s29
          %627 = vsyncadd %s618, 0
          %s628 = smul.addr %s28, 2
          %s629 = sadd.s32 %s625, %s628
          %s630 = smul.addr %s629, 4
          %s631 = scalar_lea.hbm %s7, %s630
          %s633 = sshll.u32 %s621, 4
          %s634 = int_to_ptr.vmem [resolvable:$true] %s633
          %s635 = sshll.u32 %s631, 4
          %s636 = int_to_ptr.hbm [resolvable:$true] %s635
          %638 = dma.vmem_to_hbm [thread:$0]  %s634, 128, %s636, %s618
        $region56: #{tpu_custom_call.1} parent=47 // pred_fallthru
          _
      $region48: #{tpu_custom_call.1} parent=5 // pred_fallthru
        _
      %p639 = scmp.le.s32.totalorder 2, %s19
      // Predicated region
      $region57: #{tpu_custom_call.1} parent=5 // pred_check
        %p640 = pneg %p639
      $region58: #{tpu_custom_call.1} parent=5 // pred_check_branch
        %642 = sbr.rel (%p640) target = $region60
      $region59: #{tpu_custom_call.1} parent=5 // pred_region
        %s643 = ssub.s32 %s19, 2
        // Predicated region
        $region61: #{tpu_custom_call.1} parent=59 // pred_check
          %p644 = pneg %p221
        $region62: #{tpu_custom_call.1} parent=59 // pred_check_branch
          %646 = sbr.rel (%p644) target = $region64
        $region63: #{tpu_custom_call.1} parent=59 // pred_region
          %s647 = sand.u32 %s206, 1
          %s648 = scalar_lea.sflag [#allocation4], %s647
          %s649 = sand.u32 %s206, 1
          %s650 = smul.addr %s649, 8
          %s651 = scalar_lea.vmem [#allocation5], %s650
          %653 = dma.done %s648, 128
        $region64: #{tpu_custom_call.1} parent=59 // pred_fallthru
          _
      $region60: #{tpu_custom_call.1} parent=5 // pred_fallthru
        _
    $region6: #{tpu_custom_call.1} parent=1 // loop_footer
      %s23 = sadd.s32 1, %s19
    $region7: #{tpu_custom_call.1} parent=1 // loop_footer_branch
      %18 = sbr.rel target = $region3
    $region8: #{tpu_custom_call.1} parent=1 // loop_exit
      _
    %654 = vsyncpa [#allocation3], 1
    %s655 = scalar_lea.sflag [#allocation3], 1
    %656 = vsyncpa %s655, 1
    %657 = vsyncpa [#allocation4], 1
    %s658 = scalar_lea.sflag [#allocation4], 1
    %659 = vsyncpa %s658, 1

</llo_original>
